<compile_context>
chip_gen: v7x
topology: tpu7x:2x2x1
jax: 0.10.0
libtpu: 0.0.40
codegen_flags: <defaults>
</compile_context>

<pallas_src>
import functools

import jax
import jax.numpy as jnp
from jax.experimental import pallas as pl
from jax.experimental.pallas import tpu as pltpu


# ----------------------------------------------------------------------------
# Generation-aware VMEM budget and tile planning
# ----------------------------------------------------------------------------
def _vmem_budget_bytes():
    """~75% of per-TensorCore VMEM: 48 MiB on v7x (64 MiB), 96 MiB on v5e/v6e."""
    cap = 64 * 1024 * 1024  # conservative default (v7x per-TC VMEM)
    try:
        info = pltpu.get_tpu_info()
        c = int(getattr(info, "vmem_capacity_bytes", 0) or 0)
        if c > 0:
            cap = c
    except Exception:
        pass
    return (cap * 3) // 4  # headroom for compiler-internal scratch / bookkeeping


def _largest_aligned_divisor(n, cap, align):
    """Largest d <= cap with d % align == 0 and n % d == 0, else None."""
    t = min(cap, n)
    t -= t % align
    while t >= align:
        if n % t == 0:
            return t
        t -= align
    return None


def _pick_tile(dim, cap, align):
    if dim <= cap:
        return dim
    t = _largest_aligned_divisor(dim, cap, align)
    # NOTE: ragged dims with no aligned divisor fall back to one full block.
    return t if t is not None else dim


def _pick_row_tile(M, cap):
    # MXU-friendly row alignment when M is large (256-wide MXU on v6e/v7x).
    if M >= 512 and M % 256 == 0:
        align = 256
    elif M >= 256 and M % 128 == 0:
        align = 128
    else:
        align = 8
    t = _largest_aligned_divisor(M, cap, align)
    if t is None:
        return M
    if t == M:
        # v7x megacore: prefer >= 2 row blocks so both TensorCores get work.
        t2 = _largest_aligned_divisor(M, M // 2, align)
        if t2 is not None:
            t = t2
    return t


def _plan_tiles(M, D, H, x_bytes, w_bytes, out_bytes, budget):
    """Pick (tm, th) so the double-buffered per-step footprint fits the budget."""
    tm_cap, th_cap = 1024, 2048
    while True:
        tm = _pick_row_tile(M, tm_cap)
        th = _pick_tile(H, th_cap, 128)
        footprint = (
            2 * tm * D * x_bytes            # x row tile          (double-buffered)
            + 2 * D * (2 * th) * w_bytes    # packed [w1|w3] tile (double-buffered)
            + 2 * th * D * w_bytes          # w2 tile             (double-buffered)
            + tm * D * 4                    # fp32 accumulator scratch
            + 2 * tm * D * out_bytes        # output tile         (double-buffered)
        )
        if footprint <= budget or (tm_cap <= 8 and th_cap <= 128):
            return tm, th
        if th_cap > 256:
            th_cap //= 2
        elif tm_cap > 128:
            tm_cap //= 2
        elif th_cap > 128:
            th_cap //= 2
        else:
            tm_cap = max(8, tm_cap // 2)


# ----------------------------------------------------------------------------
# Fused SwiGLU FFN kernel
# ----------------------------------------------------------------------------
def ffn_fused_kernel(x_ref, w13_ref, w2_ref, o_ref, acc_ref, *, th, compute_dtype):
    """One (row-tile i, hidden-tile j) step of  y = (silu(x@w1) * (x@w3)) @ w2."""
    j = pl.program_id(1)

    @pl.when(j == 0)
    def _():
        acc_ref[...] = jnp.zeros_like(acc_ref)

    # x block index only depends on i -> stays resident in VMEM across j.
    x = x_ref[...].astype(compute_dtype)                     # (tm, D)
    g = jnp.dot(x, w13_ref[...].astype(compute_dtype),
                preferred_element_type=jnp.float32)          # (tm, 2*th) fp32
    a = g[:, :th]
    b = g[:, th:]
    # silu(a) = a * sigmoid(a); exp -> EUP, approx reciprocal -> EUP, so the
    # epilogue hides behind the MXU work of the next pipelined tile.
    h = (a * pl.reciprocal(1.0 + jnp.exp(-a), approx=True)) * b
    acc_ref[...] += jnp.dot(h.astype(compute_dtype),
                            w2_ref[...].astype(compute_dtype),
                            preferred_element_type=jnp.float32)

    @pl.when(j == pl.num_programs(1) - 1)
    def _():
        o_ref[...] = acc_ref[...].astype(o_ref.dtype)


def ffn_fused(x2d, w13, w2, out_dtype, compute_dtype):
    """y = (silu(x2d @ w1) * (x2d @ w3)) @ w2, with w13 = concat([w1, w3], axis=1)."""
    M, D = x2d.shape
    D2, H2 = w13.shape
    H = H2 // 2
    assert D2 == D and H2 == 2 * H and w2.shape == (H, D)

    budget = _vmem_budget_bytes()
    tm, th = _plan_tiles(
        M, D, H,
        x_bytes=x2d.dtype.itemsize,
        w_bytes=w13.dtype.itemsize,
        out_bytes=x2d.dtype.itemsize,
        budget=budget,
    )
    grid = (pl.cdiv(M, tm), pl.cdiv(H, th))

    kernel = functools.partial(ffn_fused_kernel, th=th, compute_dtype=compute_dtype)
    return pl.pallas_call(
        kernel,
        out_shape=jax.ShapeDtypeStruct((M, D), out_dtype),
        grid=grid,
        in_specs=[
            pl.BlockSpec((tm, D), lambda i, j: (i, 0)),        # x row tile
            pl.BlockSpec((D, 2 * th), lambda i, j: (0, j)),    # packed [w1|w3] tile
            pl.BlockSpec((th, D), lambda i, j: (j, 0)),        # w2 tile
        ],
        out_specs=pl.BlockSpec((tm, D), lambda i, j: (i, 0)),
        scratch_shapes=[pltpu.VMEM((tm, D), jnp.float32)],     # fp32 accumulator
        compiler_params=pltpu.CompilerParams(
            dimension_semantics=("parallel", "arbitrary"),
            vmem_limit_bytes=int(budget),
        ),
    )(x2d, w13, w2)


# ----------------------------------------------------------------------------
# Module-level wrapper
# ----------------------------------------------------------------------------
def fuse_gate_weights(w1, w3):
    """Init-time (one-off) packing of the two gate projections into (D, 2H)."""
    return jnp.concatenate([w1, w3], axis=1)


@functools.partial(jax.jit, static_argnames=("dropout_p", "compute_dtype"))
def feedforward_forward(x, w13, w2, dropout_p=0.0, compute_dtype=jnp.bfloat16):
    """SwiGLU FFN forward.  w13 = concat([w1, w3], axis=1), weights as (in, out)."""
    if dropout_p:
        # TODO(synk): training-mode dropout needs pltpu PRNG; eval path only.
        raise NotImplementedError("dropout_p > 0 (training mode) not supported")
    B, S, D = x.shape
    x2d = x.reshape(B * S, D)
    y = ffn_fused(x2d, w13, w2, out_dtype=x.dtype, compute_dtype=compute_dtype)
    return y.reshape(B, S, D)


# ----------------------------------------------------------------------------
# Pure-JAX reference (same bf16 operand casts, fp32 accumulation)
# ----------------------------------------------------------------------------
def reference_forward(x, w13, w2, compute_dtype):
    cd = compute_dtype
    H = w13.shape[1] // 2
    xc = x.astype(cd)
    g = jnp.dot(xc, w13.astype(cd), preferred_element_type=jnp.float32)
    a, b = g[..., :H], g[..., H:]
    h = (a * jax.nn.sigmoid(a)) * b
    y = jnp.dot(h.astype(cd), w2.astype(cd), preferred_element_type=jnp.float32)
    return y.astype(x.dtype)


# ----------------------------------------------------------------------------
if __name__ == "__main__":
    # Config consistent with the module: hidden_dim=None -> derived SwiGLU width.
    B, S = 2, 8
    dim = 128
    multiple_of = 256
    hidden_dim = 4 * dim
    hidden_dim = int(2 * hidden_dim / 3)
    hidden_dim = multiple_of * ((hidden_dim + multiple_of - 1) // multiple_of)  # 512

    key = jax.random.PRNGKey(0)
    kx, k1, k2, k3 = jax.random.split(key, 4)

    x = jax.random.normal(kx, (B, S, dim), dtype=jnp.float32)
    # Linear weights stored as (in, out); equivalent to torch Linear W^T.
    w1 = 0.02 * jax.random.normal(k1, (dim, hidden_dim), dtype=jnp.float32)
    w3 = 0.02 * jax.random.normal(k3, (dim, hidden_dim), dtype=jnp.float32)
    w2 = 0.02 * jax.random.normal(k2, (hidden_dim, dim), dtype=jnp.float32)

    # Init-time packing: fuse the gate projections and store weights in the MXU
    # compute dtype (bf16) in HBM — done once, not per forward call.
    compute_dtype = jnp.bfloat16
    w13 = fuse_gate_weights(w1, w3).astype(compute_dtype)
    w2c = w2.astype(compute_dtype)

    out = feedforward_forward(x, w13, w2c, dropout_p=0.0, compute_dtype=compute_dtype)
    out = jax.block_until_ready(out)

    ref = reference_forward(x, w13, w2c, compute_dtype)
    assert out.shape == (B, S, dim)
    max_diff = jnp.max(jnp.abs(out - ref))
    assert jnp.allclose(out, ref, atol=2e-3, rtol=2e-2), (
        f"mismatch vs JAX reference: max abs diff = {max_diff}")

    print("KERNEL_OK")
</pallas_src>

<mosaic_0001>
module attributes {stable_mosaic.version = 11 : i64} {
  func.func @ffn_fused_kernel(%arg0: i32, %arg1: i32, %arg2: memref<8x128xf32, #tpu.memory_space<vmem>>, %arg3: memref<128x1024xbf16, #tpu.memory_space<vmem>>, %arg4: memref<512x128xbf16, #tpu.memory_space<vmem>>, %arg5: memref<8x128xf32, #tpu.memory_space<vmem>>, %arg6: memref<8x128xf32, #tpu.memory_space<vmem>>) attributes {dimension_semantics = [#tpu.dimension_semantics<parallel>, #tpu.dimension_semantics<arbitrary>], iteration_bounds = array<i64: 2, 1>, scalar_prefetch = 0 : i64, scratch_operands = 1 : i64, tpu.core_type = #tpu.core_type<tc>, window_params = [{transform_indices = @transform_0, window_bounds = array<i64: 8, 128>}, {transform_indices = @transform_1, window_bounds = array<i64: 128, 1024>}, {transform_indices = @transform_2, window_bounds = array<i64: 512, 128>}, {transform_indices = @transform_3, window_bounds = array<i64: 8, 128>}]} {
    %c0_i32 = arith.constant 0 : i32
    %0 = arith.cmpi eq, %arg1, %c0_i32 : i32
    %1 = arith.extui %0 : i1 to i32
    %c0_i32_0 = arith.constant 0 : i32
    %2 = arith.cmpi ne, %1, %c0_i32_0 : i32
    scf.if %2 {
      %cst_15 = arith.constant 0.000000e+00 : f32
      %26 = vector.broadcast %cst_15 : f32 to vector<8x128xf32>
      %c0_16 = arith.constant 0 : index
      %c0_17 = arith.constant 0 : index
      %27 = vector.load %arg6[%c0_16, %c0_17] : memref<8x128xf32, #tpu.memory_space<vmem>>, vector<8x128xf32>
      tpu.vector_store %arg6[%c0_16, %c0_17], %26 {strides = array<i32>} : memref<8x128xf32, #tpu.memory_space<vmem>>, vector<8x128xf32>,
    } else {
    }
    %c0 = arith.constant 0 : index
    %c0_1 = arith.constant 0 : index
    %3 = vector.load %arg2[%c0, %c0_1] : memref<8x128xf32, #tpu.memory_space<vmem>>, vector<8x128xf32>
    %4 = arith.truncf %3 : vector<8x128xf32> to vector<8x128xbf16>
    %c0_2 = arith.constant 0 : index
    %c0_3 = arith.constant 0 : index
    %5 = vector.load %arg3[%c0_2, %c0_3] : memref<128x1024xbf16, #tpu.memory_space<vmem>>, vector<128x1024xbf16>
    %cst = arith.constant dense<0.000000e+00> : vector<8x1024xf32>
    %6 = tpu.matmul %4, %5, %cst {dimension_numbers = #tpu.dot_dimension_numbers<[1], [0], [0], [1], [0, 0, 1, 1], [], []>} : vector<8x128xbf16>, vector<128x1024xbf16>, vector<8x1024xf32> -> vector<8x1024xf32>
    %7 = vector.extract_strided_slice %6 {offsets = [0, 0], sizes = [8, 512], strides = [1, 1]} : vector<8x1024xf32> to vector<8x512xf32>
    %8 = vector.extract_strided_slice %6 {offsets = [0, 512], sizes = [8, 512], strides = [1, 1]} : vector<8x1024xf32> to vector<8x512xf32>
    %cst_4 = arith.constant 0.000000e+00 : f32
    %9 = vector.broadcast %cst_4 : f32 to vector<8x512xf32>
    %10 = arith.subf %9, %7 : vector<8x512xf32>
    %11 = math.exp %10 : vector<8x512xf32>
    %cst_5 = arith.constant 1.000000e+00 : f32
    %12 = vector.broadcast %cst_5 : f32 to vector<8x512xf32>
    %13 = arith.addf %12, %11 : vector<8x512xf32>
    %14 = tpu.reciprocal %13 {approx = true} : vector<8x512xf32> -> vector<8x512xf32>
    %15 = arith.mulf %7, %14 : vector<8x512xf32>
    %16 = arith.mulf %15, %8 : vector<8x512xf32>
    %c0_6 = arith.constant 0 : index
    %c0_7 = arith.constant 0 : index
    %17 = vector.load %arg6[%c0_6, %c0_7] : memref<8x128xf32, #tpu.memory_space<vmem>>, vector<8x128xf32>
    %18 = arith.truncf %16 : vector<8x512xf32> to vector<8x512xbf16>
    %c0_8 = arith.constant 0 : index
    %c0_9 = arith.constant 0 : index
    %19 = vector.load %arg4[%c0_8, %c0_9] : memref<512x128xbf16, #tpu.memory_space<vmem>>, vector<512x128xbf16>
    %cst_10 = arith.constant dense<0.000000e+00> : vector<8x128xf32>
    %20 = tpu.matmul %18, %19, %cst_10 {dimension_numbers = #tpu.dot_dimension_numbers<[1], [0], [0], [1], [0, 0, 1, 1], [], []>} : vector<8x512xbf16>, vector<512x128xbf16>, vector<8x128xf32> -> vector<8x128xf32>
    %21 = arith.addf %17, %20 : vector<8x128xf32>
    %c0_11 = arith.constant 0 : index
    %c0_12 = arith.constant 0 : index
    %22 = vector.load %arg6[%c0_11, %c0_12] : memref<8x128xf32, #tpu.memory_space<vmem>>, vector<8x128xf32>
    tpu.vector_store %arg6[%c0_11, %c0_12], %21 {strides = array<i32>} : memref<8x128xf32, #tpu.memory_space<vmem>>, vector<8x128xf32>,
    %c0_i32_13 = arith.constant 0 : i32
    %23 = arith.cmpi eq, %arg1, %c0_i32_13 : i32
    %24 = arith.extui %23 : i1 to i32
    %c0_i32_14 = arith.constant 0 : i32
    %25 = arith.cmpi ne, %24, %c0_i32_14 : i32
    scf.if %25 {
      %c0_15 = arith.constant 0 : index
      %c0_16 = arith.constant 0 : index
      %26 = vector.load %arg6[%c0_15, %c0_16] : memref<8x128xf32, #tpu.memory_space<vmem>>, vector<8x128xf32>
      %c0_17 = arith.constant 0 : index
      %c0_18 = arith.constant 0 : index
      %27 = vector.load %arg5[%c0_17, %c0_18] : memref<8x128xf32, #tpu.memory_space<vmem>>, vector<8x128xf32>
      tpu.vector_store %arg5[%c0_17, %c0_18], %26 {strides = array<i32>} : memref<8x128xf32, #tpu.memory_space<vmem>>, vector<8x128xf32>,
    } else {
    }
    return
  }
  func.func @transform_0(%arg0: i32, %arg1: i32) -> (i32, i32) {
    %c0_i32 = arith.constant 0 : i32
    %c0_i32_0 = arith.constant 0 : i32
    return %arg0, %c0_i32 : i32, i32
  }
  func.func @transform_1(%arg0: i32, %arg1: i32) -> (i32, i32) {
    %c0_i32 = arith.constant 0 : i32
    %c0_i32_0 = arith.constant 0 : i32
    return %c0_i32, %arg1 : i32, i32
  }
  func.func @transform_2(%arg0: i32, %arg1: i32) -> (i32, i32) {
    %c0_i32 = arith.constant 0 : i32
    %c0_i32_0 = arith.constant 0 : i32
    return %arg1, %c0_i32 : i32, i32
  }
  func.func @transform_3(%arg0: i32, %arg1: i32) -> (i32, i32) {
    %c0_i32 = arith.constant 0 : i32
    %c0_i32_0 = arith.constant 0 : i32
    return %arg0, %c0_i32 : i32, i32
  }
}

</mosaic_0001>

<llo_original>
// kernel: feedforward_forward.1
$region0: #{feedforward_forward.1}
  #allocation0 [shape = 'u32[]', space=smem, size = 0x4, offset = 0x4, fixed_abs, tag = 'smem constant byte address 0x4 - core index']
  #allocation1 [shape = 'u32[144,128]{1,0:T(1,128)}', space=vmem, size = 0x12000, scoped, tag = 'internal scratch']
  #allocation2 [shape = 'f32[8,128]{1,0:T(8,128)}', space=vmem, size = 0x1000, scoped, tag = 'scratch operand']
  %s0 = inlined_call_operand.hbm [shape: f32[16,128], index: 0, kind: input, shape index: {}]
  %s1 = inlined_call_operand.hbm [shape: bf16[128,1024], index: 1, kind: input, shape index: {}]
  %s2 = inlined_call_operand.hbm [shape: bf16[512,128], index: 2, kind: input, shape index: {}]
  %s3 = inlined_call_operand.hbm [shape: f32[16,128], index: 3, kind: output, shape index: {}]
  %s4 = sld [smem:[#allocation0]]
  $region65: #{feedforward_forward.1} parent=0
    _
  %s6 = ssub.s32 1, %s4
  %s7 = scalar_select 0, %s6, %s4
  $region1: #{feedforward_forward.1} parent=0
    #allocation3 [shape = 'u8[8192]{0}', space=vmem, size = 0x2000, scoped, tag = 'input window, operand 0']
    #allocation4 [shape = 's32[2]{0}', space=sflag, size = 0x8, scoped, tag = 'scoped memory for feedforward_forward.1']
    #allocation5 [shape = 's32[2]{0}', space=sflag, size = 0x8, scoped, tag = 'scoped memory for feedforward_forward.1']
    #allocation6 [shape = 'u8[262144]{0}', space=vmem, size = 0x40000, scoped, tag = 'input window, operand 1, single buffered']
    #allocation7 [shape = 's32[1]{0}', space=sflag, size = 0x4, scoped, tag = 'scoped memory for feedforward_forward.1']
    #allocation8 [shape = 'u8[131072]{0}', space=vmem, size = 0x20000, scoped, tag = 'input window, operand 2, single buffered']
    #allocation9 [shape = 'u8[8192]{0}', space=vmem, size = 0x2000, scoped, tag = 'output window, operand 0']
    %8 = vsyncpa [#allocation4], 0
    %s9 = scalar_lea.sflag [#allocation4], 1
    %10 = vsyncpa %s9, 0
    %11 = vsyncpa [#allocation7], 0
    %12 = vsyncpa [#allocation5], 0
    %s13 = scalar_lea.sflag [#allocation5], 1
    %14 = vsyncpa %s13, 0
    loop: start=0, step=1, limit=4
    $region2: #{feedforward_forward.1} parent=1 // loop_pre_header
      _
    $region3: #{feedforward_forward.1} parent=1 // loop_header
      %s16 = sphi 0, %s20
      %p17 = scmp.ge.s32.totalorder %s16, 4
      %s23 = sphi 0, %s35
      %s24 = sphi 0, %s31
      %s25 = sphi 0, %s23
      %s26 = sphi 0, %s24
      %s27 = sphi 0, %s25
      %s28 = sphi 0, %s26
      %s38 = sphi 0, %s40
      %s41 = sphi 0, %s38
      %s42 = sphi 0, %s41
      %s58 = sphi 0, %s42
      %s64 = sphi 0, %s66
      %s67 = sphi 0, %s64
      %s68 = sphi 0, %s67
      %s84 = sphi 0, %s68
      %s90 = sphi 0, %s92
      %s93 = sphi 0, %s90
      %s94 = sphi 0, %s93
      %s110 = sphi 0, %s94
      %s116 = sphi 0, %s118
      %s119 = sphi 0, %s116
      %s120 = sphi 0, %s119
      %s136 = sphi 0, %s120
    $region4: #{feedforward_forward.1} parent=1 // loop_header_branch
      %19 = sbr.rel (%p17) target = $region8
    $region5: #{feedforward_forward.1} parent=1 // loop_body
      %s21 = ssub.s32 %s16, 1
      %s22 = ssub.s32 %s16, 2
      %s29 = sadd.s32 1, %s24
      %p30 = scmp.ge.s32.totalorder %s29, 1
      %s31 = scalar_select %p30, 0, %s29
      %s32 = sadd.s32 1, %s23
      %s33 = scalar_select %p30, %s32, %s23
      %p34 = scmp.ge.s32.totalorder %s33, 2
      %s35 = scalar_select %p34, 0, %s33
      %s36 = ssub.s32 %s23, %s35
      %p37 = scmp.eq.s32.totalorder %s36, 0
      %s39 = sadd.s32 %s38, 1
      %s40 = scalar_select %p37, %s38, %s39
      %p43 = pneg %p37
      %p44 = scmp.eq.s32.totalorder %s16, 1
      %p45 = por %p43, %p44
      %p46 = scmp.ne.s32.totalorder %s38, %s41
      %p47 = scmp.eq.s32.totalorder %s16, 0
      %p48 = por %p46, %p47
      %p49 = scmp.ne.s32.totalorder %s38, %s41
      %p50 = scmp.eq.s32.totalorder %s21, 1
      %p51 = por %p49, %p50
      %p52 = scmp.ne.s32.totalorder %s41, %s42
      %p53 = scmp.eq.s32.totalorder %s21, 0
      %p54 = por %p52, %p53
      %p55 = scmp.ne.s32.totalorder %s41, %s42
      %p56 = scmp.eq.s32.totalorder %s22, 1
      %p57 = por %p55, %p56
      %p59 = scmp.ne.s32.totalorder %s42, %s58
      %p60 = scmp.eq.s32.totalorder %s22, 0
      %p61 = por %p59, %p60
      %s62 = ssub.s32 %s24, %s31
      %p63 = scmp.eq.s32.totalorder %s62, 0
      %s65 = sadd.s32 %s64, 1
      %s66 = scalar_select %p63, %s64, %s65
      %p69 = pneg %p63
      %p70 = scmp.eq.s32.totalorder %s16, 1
      %p71 = por %p69, %p70
      %p72 = scmp.ne.s32.totalorder %s64, %s67
      %p73 = scmp.eq.s32.totalorder %s16, 0
      %p74 = por %p72, %p73
      %p75 = scmp.ne.s32.totalorder %s64, %s67
      %p76 = scmp.eq.s32.totalorder %s21, 1
      %p77 = por %p75, %p76
      %p78 = scmp.ne.s32.totalorder %s67, %s68
      %p79 = scmp.eq.s32.totalorder %s21, 0
      %p80 = por %p78, %p79
      %p81 = scmp.ne.s32.totalorder %s67, %s68
      %p82 = scmp.eq.s32.totalorder %s22, 1
      %p83 = por %p81, %p82
      %p85 = scmp.ne.s32.totalorder %s68, %s84
      %p86 = scmp.eq.s32.totalorder %s22, 0
      %p87 = por %p85, %p86
      %s88 = ssub.s32 %s24, %s31
      %p89 = scmp.eq.s32.totalorder %s88, 0
      %s91 = sadd.s32 %s90, 1
      %s92 = scalar_select %p89, %s90, %s91
      %p95 = pneg %p89
      %p96 = scmp.eq.s32.totalorder %s16, 1
      %p97 = por %p95, %p96
      %p98 = scmp.ne.s32.totalorder %s90, %s93
      %p99 = scmp.eq.s32.totalorder %s16, 0
      %p100 = por %p98, %p99
      %p101 = scmp.ne.s32.totalorder %s90, %s93
      %p102 = scmp.eq.s32.totalorder %s21, 1
      %p103 = por %p101, %p102
      %p104 = scmp.ne.s32.totalorder %s93, %s94
      %p105 = scmp.eq.s32.totalorder %s21, 0
      %p106 = por %p104, %p105
      %p107 = scmp.ne.s32.totalorder %s93, %s94
      %p108 = scmp.eq.s32.totalorder %s22, 1
      %p109 = por %p107, %p108
      %p111 = scmp.ne.s32.totalorder %s94, %s110
      %p112 = scmp.eq.s32.totalorder %s22, 0
      %p113 = por %p111, %p112
      %s114 = ssub.s32 %s23, %s35
      %p115 = scmp.eq.s32.totalorder %s114, 0
      %s117 = sadd.s32 %s116, 1
      %s118 = scalar_select %p115, %s116, %s117
      %p121 = pneg %p115
      %p122 = scmp.eq.s32.totalorder %s16, 1
      %p123 = por %p121, %p122
      %p124 = scmp.ne.s32.totalorder %s116, %s119
      %p125 = scmp.eq.s32.totalorder %s16, 0
      %p126 = por %p124, %p125
      %p127 = scmp.ne.s32.totalorder %s116, %s119
      %p128 = scmp.eq.s32.totalorder %s21, 1
      %p129 = por %p127, %p128
      %p130 = scmp.ne.s32.totalorder %s119, %s120
      %p131 = scmp.eq.s32.totalorder %s21, 0
      %p132 = por %p130, %p131
      %p133 = scmp.ne.s32.totalorder %s119, %s120
      %p134 = scmp.eq.s32.totalorder %s22, 1
      %p135 = por %p133, %p134
      %p137 = scmp.ne.s32.totalorder %s120, %s136
      %p138 = scmp.eq.s32.totalorder %s22, 0
      %p139 = por %p137, %p138
      %p140 = scmp.le.s32.totalorder 1, %s16
      %p141 = scmp.lt.s32.totalorder %s16, 3
      %p142 = pnand %p140, %p141
      %p143 = pneg %p142
      // Predicated region
      $region9: #{feedforward_forward.1} parent=5 // pred_check
        _
      $region10: #{feedforward_forward.1} parent=5 // pred_check_branch
        %145 = sbr.rel (%p142) target = $region12
      $region11: #{feedforward_forward.1} parent=5 // pred_region
        %s146 = ssub.s32 %s16, 1
        // Predicated region
        $region13: #{feedforward_forward.1} parent=11 // pred_check
          %p147 = pneg %p80
        $region14: #{feedforward_forward.1} parent=11 // pred_check_branch
          %149 = sbr.rel (%p147) target = $region16
        $region15: #{feedforward_forward.1} parent=11 // pred_region
          %s150 = smul.u32 8, %s26
          %s152 = ssub.s32 8192, 8192
          %153 = vsyncadd [#allocation7], %s152
          %s154 = smul.addr %s150, 64
          %s155 = scalar_lea.hbm %s1, %s154
          %s156 = sshll.u32 [#allocation6], 4
          %s157 = int_to_ptr.vmem [resolvable:$true] %s156
          %162 = dma.hbm_to_vmem [thread:$0]  %s155, 8192, %s157, [#allocation7], 512, 512, 32
        $region16: #{feedforward_forward.1} parent=11 // pred_fallthru
          _
        // Predicated region
        $region17: #{feedforward_forward.1} parent=11 // pred_check
          %p163 = pneg %p106
        $region18: #{feedforward_forward.1} parent=11 // pred_check_branch
          %165 = sbr.rel (%p163) target = $region20
        $region19: #{feedforward_forward.1} parent=11 // pred_region
          %s166 = smul.u32 64, %s26
          %s168 = ssub.s32 4096, 4096
          %169 = vsyncadd [#allocation7], %s168
          %s170 = smul.addr %s166, 64
          %s171 = scalar_lea.hbm %s2, %s170
          %s172 = sshll.u32 [#allocation8], 4
          %s173 = int_to_ptr.vmem [resolvable:$true] %s172
          %178 = dma.hbm_to_vmem [thread:$0]  %s171, 4096, %s173, [#allocation7], 64, 64, 4
        $region20: #{feedforward_forward.1} parent=11 // pred_fallthru
          _
      $region12: #{feedforward_forward.1} parent=5 // pred_fallthru
        _
      %p179 = scmp.lt.s32.totalorder %s16, 2
      // Predicated region
      $region21: #{feedforward_forward.1} parent=5 // pred_check
        %p180 = pneg %p179
      $region22: #{feedforward_forward.1} parent=5 // pred_check_branch
        %182 = sbr.rel (%p180) target = $region24
      $region23: #{feedforward_forward.1} parent=5 // pred_region
        // Predicated region
        $region25: #{feedforward_forward.1} parent=23 // pred_check
          %p183 = pneg %p48
        $region26: #{feedforward_forward.1} parent=23 // pred_check_branch
          %185 = sbr.rel (%p183) target = $region28
        $region27: #{feedforward_forward.1} parent=23 // pred_region
          %s186 = sand.u32 %s38, 1
          %s187 = scalar_lea.sflag [#allocation4], %s186
          %s188 = sand.u32 %s38, 1
          %s189 = smul.addr %s188, 8
          %s190 = scalar_lea.vmem [#allocation3], %s189
          %s192 = ssub.s32 128, 128
          %193 = vsyncadd %s187, %s192
          %s194 = smul.addr %s23, 128
          %s195 = scalar_lea.hbm %s0, %s194
          %s197 = sshll.u32 %s190, 4
          %s198 = int_to_ptr.vmem [resolvable:$true] %s197
          %200 = dma.hbm_to_vmem [thread:$0]  %s195, 128, %s198, %s187
        $region28: #{feedforward_forward.1} parent=23 // pred_fallthru
          _
      $region24: #{feedforward_forward.1} parent=5 // pred_fallthru
        _
      %p201 = scmp.le.s32.totalorder 1, %s16
      %p202 = scmp.lt.s32.totalorder %s16, 3
      %p203 = pnand %p201, %p202
      %p204 = pneg %p203
      // Predicated region
      $region29: #{feedforward_forward.1} parent=5 // pred_check
        _
      $region30: #{feedforward_forward.1} parent=5 // pred_check_branch
        %206 = sbr.rel (%p203) target = $region32
      $region31: #{feedforward_forward.1} parent=5 // pred_region
        %s207 = ssub.s32 %s16, 1
        %s208 = sand.u32 %s41, 1
        %s209 = scalar_lea.sflag [#allocation4], %s208
        %s210 = sand.u32 %s41, 1
        %s211 = smul.addr %s210, 8
        %s212 = scalar_lea.vmem [#allocation3], %s211
        // Predicated region
        $region33: #{feedforward_forward.1} parent=31 // pred_check
          %p213 = pneg %p54
        $region34: #{feedforward_forward.1} parent=31 // pred_check_branch
          %215 = sbr.rel (%p213) target = $region36
        $region35: #{feedforward_forward.1} parent=31 // pred_region
          %216 = dma.done %s209, 128
        $region36: #{feedforward_forward.1} parent=31 // pred_fallthru
          _
        // Predicated region
        $region37: #{feedforward_forward.1} parent=31 // pred_check
          %p217 = pneg %p80
        $region38: #{feedforward_forward.1} parent=31 // pred_check_branch
          %219 = sbr.rel (%p217) target = $region40
        $region39: #{feedforward_forward.1} parent=31 // pred_region
          %220 = dma.done [#allocation7], 8192
        $region40: #{feedforward_forward.1} parent=31 // pred_fallthru
          _
        // Predicated region
        $region41: #{feedforward_forward.1} parent=31 // pred_check
          %p221 = pneg %p106
        $region42: #{feedforward_forward.1} parent=31 // pred_check_branch
          %223 = sbr.rel (%p221) target = $region44
        $region43: #{feedforward_forward.1} parent=31 // pred_region
          %224 = dma.done [#allocation7], 4096
        $region44: #{feedforward_forward.1} parent=31 // pred_fallthru
          _
        %s225 = sand.u32 %s41, 1
        %s226 = scalar_lea.sflag [#allocation4], %s225
        %s227 = sand.u32 %s41, 1
        %s228 = smul.addr %s227, 8
        %s229 = scalar_lea.vmem [#allocation3], %s228
        %p230 = pneg %p54
        %p231 = pneg %p51
        %p232 = pneg %p80
        %p233 = pneg %p77
        %p234 = pneg %p106
        %p235 = pneg %p103
        %p236 = pneg %p132
        %p237 = pneg %p129
        %s238 = sand.u32 %s119, 1
        %s239 = scalar_lea.sflag [#allocation5], %s238
        %s240 = sand.u32 %s119, 1
        %s241 = smul.addr %s240, 8
        %s242 = scalar_lea.vmem [#allocation9], %s241
        %s243 = smul.u32 8, %s26
        %s244 = smul.u32 64, %s26
        %p246 = scmp.eq.s32.totalorder %s26, 0
        // Predicated region
        $region45: #{feedforward_forward.1} parent=31 // pred_check
          %p247 = pneg %p246
        $region46: #{feedforward_forward.1} parent=31 // pred_check_branch
          %249 = sbr.rel (%p247) target = $region48
        $region47: #{feedforward_forward.1} parent=31 // pred_region
          %250 = vst [vmem:[#allocation2] sm:$0xff] 0.0
        $region48: #{feedforward_forward.1} parent=31 // pred_fallthru
          _
        %v251 = vld [vmem:[%s212] sm:$0xff]
        %v252 = vpack.c.bf16 %v251, %v251
        %v253 = vld [vmem:[#allocation6] sm:$0xff]
        %v254 = vld [vmem:[#allocation6 + $0x8] sm:$0xff]
        %v255 = vld [vmem:[#allocation6 + $0x10] sm:$0xff]
        %v256 = vld [vmem:[#allocation6 + $0x18] sm:$0xff]
        %v257 = vld [vmem:[#allocation6 + $0x20] sm:$0xff]
        %v258 = vld [vmem:[#allocation6 + $0x28] sm:$0xff]
        %v259 = vld [vmem:[#allocation6 + $0x30] sm:$0xff]
        %v260 = vld [vmem:[#allocation6 + $0x38] sm:$0xff]
        %v261 = vld [vmem:[#allocation6 + $0x40] sm:$0xff]
        %v262 = vld [vmem:[#allocation6 + $0x48] sm:$0xff]
        %v263 = vld [vmem:[#allocation6 + $0x50] sm:$0xff]
        %v264 = vld [vmem:[#allocation6 + $0x58] sm:$0xff]
        %v265 = vld [vmem:[#allocation6 + $0x60] sm:$0xff]
        %v266 = vld [vmem:[#allocation6 + $0x68] sm:$0xff]
        %v267 = vld [vmem:[#allocation6 + $0x70] sm:$0xff]
        %v268 = vld [vmem:[#allocation6 + $0x78] sm:$0xff]
        %v269 = vld [vmem:[#allocation6 + $0x80] sm:$0xff]
        %v270 = vld [vmem:[#allocation6 + $0x88] sm:$0xff]
        %v271 = vld [vmem:[#allocation6 + $0x90] sm:$0xff]
        %v272 = vld [vmem:[#allocation6 + $0x98] sm:$0xff]
        %v273 = vld [vmem:[#allocation6 + $0xa0] sm:$0xff]
        %v274 = vld [vmem:[#allocation6 + $0xa8] sm:$0xff]
        %v275 = vld [vmem:[#allocation6 + $0xb0] sm:$0xff]
        %v276 = vld [vmem:[#allocation6 + $0xb8] sm:$0xff]
        %v277 = vld [vmem:[#allocation6 + $0xc0] sm:$0xff]
        %v278 = vld [vmem:[#allocation6 + $0xc8] sm:$0xff]
        %v279 = vld [vmem:[#allocation6 + $0xd0] sm:$0xff]
        %v280 = vld [vmem:[#allocation6 + $0xd8] sm:$0xff]
        %v281 = vld [vmem:[#allocation6 + $0xe0] sm:$0xff]
        %v282 = vld [vmem:[#allocation6 + $0xe8] sm:$0xff]
        %v283 = vld [vmem:[#allocation6 + $0xf0] sm:$0xff]
        %v284 = vld [vmem:[#allocation6 + $0xf8] sm:$0xff]
        %v285 = vld [vmem:[#allocation6 + $0x100] sm:$0xff]
        %v286 = vld [vmem:[#allocation6 + $0x108] sm:$0xff]
        %v287 = vld [vmem:[#allocation6 + $0x110] sm:$0xff]
        %v288 = vld [vmem:[#allocation6 + $0x118] sm:$0xff]
        %v289 = vld [vmem:[#allocation6 + $0x120] sm:$0xff]
        %v290 = vld [vmem:[#allocation6 + $0x128] sm:$0xff]
        %v291 = vld [vmem:[#allocation6 + $0x130] sm:$0xff]
        %v292 = vld [vmem:[#allocation6 + $0x138] sm:$0xff]
        %v293 = vld [vmem:[#allocation6 + $0x140] sm:$0xff]
        %v294 = vld [vmem:[#allocation6 + $0x148] sm:$0xff]
        %v295 = vld [vmem:[#allocation6 + $0x150] sm:$0xff]
        %v296 = vld [vmem:[#allocation6 + $0x158] sm:$0xff]
        %v297 = vld [vmem:[#allocation6 + $0x160] sm:$0xff]
        %v298 = vld [vmem:[#allocation6 + $0x168] sm:$0xff]
        %v299 = vld [vmem:[#allocation6 + $0x170] sm:$0xff]
        %v300 = vld [vmem:[#allocation6 + $0x178] sm:$0xff]
        %v301 = vld [vmem:[#allocation6 + $0x180] sm:$0xff]
        %v302 = vld [vmem:[#allocation6 + $0x188] sm:$0xff]
        %v303 = vld [vmem:[#allocation6 + $0x190] sm:$0xff]
        %v304 = vld [vmem:[#allocation6 + $0x198] sm:$0xff]
        %v305 = vld [vmem:[#allocation6 + $0x1a0] sm:$0xff]
        %v306 = vld [vmem:[#allocation6 + $0x1a8] sm:$0xff]
        %v307 = vld [vmem:[#allocation6 + $0x1b0] sm:$0xff]
        %v308 = vld [vmem:[#allocation6 + $0x1b8] sm:$0xff]
        %v309 = vld [vmem:[#allocation6 + $0x1c0] sm:$0xff]
        %v310 = vld [vmem:[#allocation6 + $0x1c8] sm:$0xff]
        %v311 = vld [vmem:[#allocation6 + $0x1d0] sm:$0xff]
        %v312 = vld [vmem:[#allocation6 + $0x1d8] sm:$0xff]
        %v313 = vld [vmem:[#allocation6 + $0x1e0] sm:$0xff]
        %v314 = vld [vmem:[#allocation6 + $0x1e8] sm:$0xff]
        %v315 = vld [vmem:[#allocation6 + $0x1f0] sm:$0xff]
        %v316 = vld [vmem:[#allocation6 + $0x1f8] sm:$0xff]
        %v381 = vunpack.c.l.b16 %v253
        %v382 = vunpack.c.h.b16 %v253
        %v383 = vunpack.c.l.b16 %v254
        %v384 = vunpack.c.h.b16 %v254
        %v385 = vunpack.c.l.b16 %v255
        %v386 = vunpack.c.h.b16 %v255
        %v387 = vunpack.c.l.b16 %v256
        %v388 = vunpack.c.h.b16 %v256
        %v389 = vunpack.c.l.b16 %v257
        %v390 = vunpack.c.h.b16 %v257
        %v391 = vunpack.c.l.b16 %v258
        %v392 = vunpack.c.h.b16 %v258
        %v393 = vunpack.c.l.b16 %v259
        %v394 = vunpack.c.h.b16 %v259
        %v395 = vunpack.c.l.b16 %v260
        %v396 = vunpack.c.h.b16 %v260
        %v397 = vunpack.c.l.b16 %v261
        %v398 = vunpack.c.h.b16 %v261
        %v399 = vunpack.c.l.b16 %v262
        %v400 = vunpack.c.h.b16 %v262
        %v401 = vunpack.c.l.b16 %v263
        %v402 = vunpack.c.h.b16 %v263
        %v403 = vunpack.c.l.b16 %v264
        %v404 = vunpack.c.h.b16 %v264
        %v405 = vunpack.c.l.b16 %v265
        %v406 = vunpack.c.h.b16 %v265
        %v407 = vunpack.c.l.b16 %v266
        %v408 = vunpack.c.h.b16 %v266
        %v409 = vunpack.c.l.b16 %v267
        %v410 = vunpack.c.h.b16 %v267
        %v411 = vunpack.c.l.b16 %v268
        %v412 = vunpack.c.h.b16 %v268
        %v413 = vunpack.c.l.b16 %v269
        %v414 = vunpack.c.h.b16 %v269
        %v415 = vunpack.c.l.b16 %v270
        %v416 = vunpack.c.h.b16 %v270
        %v417 = vunpack.c.l.b16 %v271
        %v418 = vunpack.c.h.b16 %v271
        %v419 = vunpack.c.l.b16 %v272
        %v420 = vunpack.c.h.b16 %v272
        %v421 = vunpack.c.l.b16 %v273
        %v422 = vunpack.c.h.b16 %v273
        %v423 = vunpack.c.l.b16 %v274
        %v424 = vunpack.c.h.b16 %v274
        %v425 = vunpack.c.l.b16 %v275
        %v426 = vunpack.c.h.b16 %v275
        %v427 = vunpack.c.l.b16 %v276
        %v428 = vunpack.c.h.b16 %v276
        %v429 = vunpack.c.l.b16 %v277
        %v430 = vunpack.c.h.b16 %v277
        %v431 = vunpack.c.l.b16 %v278
        %v432 = vunpack.c.h.b16 %v278
        %v433 = vunpack.c.l.b16 %v279
        %v434 = vunpack.c.h.b16 %v279
        %v435 = vunpack.c.l.b16 %v280
        %v436 = vunpack.c.h.b16 %v280
        %v437 = vunpack.c.l.b16 %v281
        %v438 = vunpack.c.h.b16 %v281
        %v439 = vunpack.c.l.b16 %v282
        %v440 = vunpack.c.h.b16 %v282
        %v441 = vunpack.c.l.b16 %v283
        %v442 = vunpack.c.h.b16 %v283
        %v443 = vunpack.c.l.b16 %v284
        %v444 = vunpack.c.h.b16 %v284
        %v445 = vunpack.c.l.b16 %v285
        %v446 = vunpack.c.h.b16 %v285
        %v447 = vunpack.c.l.b16 %v286
        %v448 = vunpack.c.h.b16 %v286
        %v449 = vunpack.c.l.b16 %v287
        %v450 = vunpack.c.h.b16 %v287
        %v451 = vunpack.c.l.b16 %v288
        %v452 = vunpack.c.h.b16 %v288
        %v453 = vunpack.c.l.b16 %v289
        %v454 = vunpack.c.h.b16 %v289
        %v455 = vunpack.c.l.b16 %v290
        %v456 = vunpack.c.h.b16 %v290
        %v457 = vunpack.c.l.b16 %v291
        %v458 = vunpack.c.h.b16 %v291
        %v459 = vunpack.c.l.b16 %v292
        %v460 = vunpack.c.h.b16 %v292
        %v461 = vunpack.c.l.b16 %v293
        %v462 = vunpack.c.h.b16 %v293
        %v463 = vunpack.c.l.b16 %v294
        %v464 = vunpack.c.h.b16 %v294
        %v465 = vunpack.c.l.b16 %v295
        %v466 = vunpack.c.h.b16 %v295
        %v467 = vunpack.c.l.b16 %v296
        %v468 = vunpack.c.h.b16 %v296
        %v469 = vunpack.c.l.b16 %v297
        %v470 = vunpack.c.h.b16 %v297
        %v471 = vunpack.c.l.b16 %v298
        %v472 = vunpack.c.h.b16 %v298
        %v473 = vunpack.c.l.b16 %v299
        %v474 = vunpack.c.h.b16 %v299
        %v475 = vunpack.c.l.b16 %v300
        %v476 = vunpack.c.h.b16 %v300
        %v477 = vunpack.c.l.b16 %v301
        %v478 = vunpack.c.h.b16 %v301
        %v479 = vunpack.c.l.b16 %v302
        %v480 = vunpack.c.h.b16 %v302
        %v481 = vunpack.c.l.b16 %v303
        %v482 = vunpack.c.h.b16 %v303
        %v483 = vunpack.c.l.b16 %v304
        %v484 = vunpack.c.h.b16 %v304
        %v485 = vunpack.c.l.b16 %v305
        %v486 = vunpack.c.h.b16 %v305
        %v487 = vunpack.c.l.b16 %v306
        %v488 = vunpack.c.h.b16 %v306
        %v489 = vunpack.c.l.b16 %v307
        %v490 = vunpack.c.h.b16 %v307
        %v491 = vunpack.c.l.b16 %v308
        %v492 = vunpack.c.h.b16 %v308
        %v493 = vunpack.c.l.b16 %v309
        %v494 = vunpack.c.h.b16 %v309
        %v495 = vunpack.c.l.b16 %v310
        %v496 = vunpack.c.h.b16 %v310
        %v497 = vunpack.c.l.b16 %v311
        %v498 = vunpack.c.h.b16 %v311
        %v499 = vunpack.c.l.b16 %v312
        %v500 = vunpack.c.h.b16 %v312
        %v501 = vunpack.c.l.b16 %v313
        %v502 = vunpack.c.h.b16 %v313
        %v503 = vunpack.c.l.b16 %v314
        %v504 = vunpack.c.h.b16 %v314
        %v505 = vunpack.c.l.b16 %v315
        %v506 = vunpack.c.h.b16 %v315
        %v507 = vunpack.c.l.b16 %v316
        %v508 = vunpack.c.h.b16 %v316
        %v509 = vpack.c.b16 %v389, %v381
        %v510 = vpack.c.b16 %v390, %v382
        %v511 = vpack.c.b16 %v391, %v383
        %v512 = vpack.c.b16 %v392, %v384
        %v513 = vpack.c.b16 %v393, %v385
        %v514 = vpack.c.b16 %v394, %v386
        %v515 = vpack.c.b16 %v395, %v387
        %v516 = vpack.c.b16 %v396, %v388
        %v517 = vpack.c.b16 %v405, %v397
        %v518 = vpack.c.b16 %v406, %v398
        %v519 = vpack.c.b16 %v407, %v399
        %v520 = vpack.c.b16 %v408, %v400
        %v521 = vpack.c.b16 %v409, %v401
        %v522 = vpack.c.b16 %v410, %v402
        %v523 = vpack.c.b16 %v411, %v403
        %v524 = vpack.c.b16 %v412, %v404
        %v525 = vpack.c.b16 %v421, %v413
        %v526 = vpack.c.b16 %v422, %v414
        %v527 = vpack.c.b16 %v423, %v415
        %v528 = vpack.c.b16 %v424, %v416
        %v529 = vpack.c.b16 %v425, %v417
        %v530 = vpack.c.b16 %v426, %v418
        %v531 = vpack.c.b16 %v427, %v419
        %v532 = vpack.c.b16 %v428, %v420
        %v533 = vpack.c.b16 %v437, %v429
        %v534 = vpack.c.b16 %v438, %v430
        %v535 = vpack.c.b16 %v439, %v431
        %v536 = vpack.c.b16 %v440, %v432
        %v537 = vpack.c.b16 %v441, %v433
        %v538 = vpack.c.b16 %v442, %v434
        %v539 = vpack.c.b16 %v443, %v435
        %v540 = vpack.c.b16 %v444, %v436
        %v541 = vpack.c.b16 %v453, %v445
        %v542 = vpack.c.b16 %v454, %v446
        %v543 = vpack.c.b16 %v455, %v447
        %v544 = vpack.c.b16 %v456, %v448
        %v545 = vpack.c.b16 %v457, %v449
        %v546 = vpack.c.b16 %v458, %v450
        %v547 = vpack.c.b16 %v459, %v451
        %v548 = vpack.c.b16 %v460, %v452
        %v549 = vpack.c.b16 %v469, %v461
        %v550 = vpack.c.b16 %v470, %v462
        %v551 = vpack.c.b16 %v471, %v463
        %v552 = vpack.c.b16 %v472, %v464
        %v553 = vpack.c.b16 %v473, %v465
        %v554 = vpack.c.b16 %v474, %v466
        %v555 = vpack.c.b16 %v475, %v467
        %v556 = vpack.c.b16 %v476, %v468
        %v557 = vpack.c.b16 %v485, %v477
        %v558 = vpack.c.b16 %v486, %v478
        %v559 = vpack.c.b16 %v487, %v479
        %v560 = vpack.c.b16 %v488, %v480
        %v561 = vpack.c.b16 %v489, %v481
        %v562 = vpack.c.b16 %v490, %v482
        %v563 = vpack.c.b16 %v491, %v483
        %v564 = vpack.c.b16 %v492, %v484
        %v565 = vpack.c.b16 %v501, %v493
        %v566 = vpack.c.b16 %v502, %v494
        %v567 = vpack.c.b16 %v503, %v495
        %v568 = vpack.c.b16 %v504, %v496
        %v569 = vpack.c.b16 %v505, %v497
        %v570 = vpack.c.b16 %v506, %v498
        %v571 = vpack.c.b16 %v507, %v499
        %v572 = vpack.c.b16 %v508, %v500
        %637 = vmatprep.subr.bf16.mxu0 %v510
        %638 = vmatpush1.bf16.msra.mxu0 %v509
        %639 = vmatprep.subr.bf16.mxu0 %v518
        %640 = vmatpush1.bf16.msra.mxu0 %v517
        %641 = vmatprep.subr.bf16.mxu0 %v526
        %642 = vmatpush1.bf16.msra.mxu0 %v525
        %643 = vmatprep.subr.bf16.mxu0 %v534
        %644 = vmatpush1.bf16.msra.mxu0 %v533
        %645 = vmatprep.subr.bf16.mxu0 %v542
        %646 = vmatpush1.bf16.msra.mxu0 %v541
        %647 = vmatprep.subr.bf16.mxu0 %v550
        %648 = vmatpush1.bf16.msra.mxu0 %v549
        %649 = vmatprep.subr.bf16.mxu0 %v558
        %650 = vmatpush1.bf16.msra.mxu0 %v557
        %651 = vmatprep.subr.bf16.mxu0 %v566
        %652 = vmatpush1.bf16.msra.mxu0 %v565
        %653 = vmatprep.subr.bf16.mxu0 0
        %654 = vmatpush1.bf16.msra.mxu0 0
        %655 = vmatprep.subr.bf16.mxu0 0
        %656 = vmatpush1.bf16.msra.mxu0 0
        %657 = vmatprep.subr.bf16.mxu0 0
        %658 = vmatpush1.bf16.msra.mxu0 0
        %659 = vmatprep.subr.bf16.mxu0 0
        %660 = vmatpush1.bf16.msra.mxu0 0
        %661 = vmatprep.subr.bf16.mxu0 0
        %662 = vmatpush1.bf16.msra.mxu0 0
        %663 = vmatprep.subr.bf16.mxu0 0
        %664 = vmatpush1.bf16.msra.mxu0 0
        %665 = vmatprep.subr.bf16.mxu0 0
        %666 = vmatpush1.bf16.msra.mxu0 0
        %667 = vmatprep.subr.bf16.mxu0 0
        %668 = vmatpush1.bf16.msra.mxu0 0
        %669 = vmatprep.mubr.bf16.mxu0 0
        %670 = vmatmul.mubr.bf16.gmra.mrb[0].mxu0 %v252
        %v671 = vpop.f32.mrb[0].mxu0
        %v672 = vadd.f32 0.0, %v671
        %v673 = vpop.f32.mrb[0].mxu0
        %v674 = vadd.f32 0.0, %v673
        %v675 = vpop.f32.mrb[0].mxu0
        %v676 = vpop.f32.mrb[0].mxu0
        %677 = vdwg.mxu0
        %678 = vmatprep.subr.bf16.mxu0 %v512
        %679 = vmatpush1.bf16.msra.mxu0 %v511
        %680 = vmatprep.subr.bf16.mxu0 %v520
        %681 = vmatpush1.bf16.msra.mxu0 %v519
        %682 = vmatprep.subr.bf16.mxu0 %v528
        %683 = vmatpush1.bf16.msra.mxu0 %v527
        %684 = vmatprep.subr.bf16.mxu0 %v536
        %685 = vmatpush1.bf16.msra.mxu0 %v535
        %686 = vmatprep.subr.bf16.mxu0 %v544
        %687 = vmatpush1.bf16.msra.mxu0 %v543
        %688 = vmatprep.subr.bf16.mxu0 %v552
        %689 = vmatpush1.bf16.msra.mxu0 %v551
        %690 = vmatprep.subr.bf16.mxu0 %v560
        %691 = vmatpush1.bf16.msra.mxu0 %v559
        %692 = vmatprep.subr.bf16.mxu0 %v568
        %693 = vmatpush1.bf16.msra.mxu0 %v567
        %694 = vmatprep.subr.bf16.mxu0 0
        %695 = vmatpush1.bf16.msra.mxu0 0
        %696 = vmatprep.subr.bf16.mxu0 0
        %697 = vmatpush1.bf16.msra.mxu0 0
        %698 = vmatprep.subr.bf16.mxu0 0
        %699 = vmatpush1.bf16.msra.mxu0 0
        %700 = vmatprep.subr.bf16.mxu0 0
        %701 = vmatpush1.bf16.msra.mxu0 0
        %702 = vmatprep.subr.bf16.mxu0 0
        %703 = vmatpush1.bf16.msra.mxu0 0
        %704 = vmatprep.subr.bf16.mxu0 0
        %705 = vmatpush1.bf16.msra.mxu0 0
        %706 = vmatprep.subr.bf16.mxu0 0
        %707 = vmatpush1.bf16.msra.mxu0 0
        %708 = vmatprep.subr.bf16.mxu0 0
        %709 = vmatpush1.bf16.msra.mxu0 0
        %710 = vmatprep.mubr.bf16.mxu0 0
        %711 = vmatmul.mubr.bf16.gmra.mrb[0].mxu0 %v252
        %v712 = vpop.f32.mrb[0].mxu0
        %v713 = vadd.f32 0.0, %v712
        %v714 = vpop.f32.mrb[0].mxu0
        %v715 = vadd.f32 0.0, %v714
        %v716 = vpop.f32.mrb[0].mxu0
        %v717 = vpop.f32.mrb[0].mxu0
        %718 = vdwg.mxu0
        %719 = vmatprep.subr.bf16.mxu0 %v514
        %720 = vmatpush1.bf16.msra.mxu0 %v513
        %721 = vmatprep.subr.bf16.mxu0 %v522
        %722 = vmatpush1.bf16.msra.mxu0 %v521
        %723 = vmatprep.subr.bf16.mxu0 %v530
        %724 = vmatpush1.bf16.msra.mxu0 %v529
        %725 = vmatprep.subr.bf16.mxu0 %v538
        %726 = vmatpush1.bf16.msra.mxu0 %v537
        %727 = vmatprep.subr.bf16.mxu0 %v546
        %728 = vmatpush1.bf16.msra.mxu0 %v545
        %729 = vmatprep.subr.bf16.mxu0 %v554
        %730 = vmatpush1.bf16.msra.mxu0 %v553
        %731 = vmatprep.subr.bf16.mxu0 %v562
        %732 = vmatpush1.bf16.msra.mxu0 %v561
        %733 = vmatprep.subr.bf16.mxu0 %v570
        %734 = vmatpush1.bf16.msra.mxu0 %v569
        %735 = vmatprep.subr.bf16.mxu0 0
        %736 = vmatpush1.bf16.msra.mxu0 0
        %737 = vmatprep.subr.bf16.mxu0 0
        %738 = vmatpush1.bf16.msra.mxu0 0
        %739 = vmatprep.subr.bf16.mxu0 0
        %740 = vmatpush1.bf16.msra.mxu0 0
        %741 = vmatprep.subr.bf16.mxu0 0
        %742 = vmatpush1.bf16.msra.mxu0 0
        %743 = vmatprep.subr.bf16.mxu0 0
        %744 = vmatpush1.bf16.msra.mxu0 0
        %745 = vmatprep.subr.bf16.mxu0 0
        %746 = vmatpush1.bf16.msra.mxu0 0
        %747 = vmatprep.subr.bf16.mxu0 0
        %748 = vmatpush1.bf16.msra.mxu0 0
        %749 = vmatprep.subr.bf16.mxu0 0
        %750 = vmatpush1.bf16.msra.mxu0 0
        %751 = vmatprep.mubr.bf16.mxu0 0
        %752 = vmatmul.mubr.bf16.gmra.mrb[0].mxu0 %v252
        %v753 = vpop.f32.mrb[0].mxu0
        %v754 = vadd.f32 0.0, %v753
        %v755 = vpop.f32.mrb[0].mxu0
        %v756 = vadd.f32 0.0, %v755
        %v757 = vpop.f32.mrb[0].mxu0
        %v758 = vpop.f32.mrb[0].mxu0
        %759 = vdwg.mxu0
        %760 = vmatprep.subr.bf16.mxu0 %v516
        %761 = vmatpush1.bf16.msra.mxu0 %v515
        %762 = vmatprep.subr.bf16.mxu0 %v524
        %763 = vmatpush1.bf16.msra.mxu0 %v523
        %764 = vmatprep.subr.bf16.mxu0 %v532
        %765 = vmatpush1.bf16.msra.mxu0 %v531
        %766 = vmatprep.subr.bf16.mxu0 %v540
        %767 = vmatpush1.bf16.msra.mxu0 %v539
        %768 = vmatprep.subr.bf16.mxu0 %v548
        %769 = vmatpush1.bf16.msra.mxu0 %v547
        %770 = vmatprep.subr.bf16.mxu0 %v556
        %771 = vmatpush1.bf16.msra.mxu0 %v555
        %772 = vmatprep.subr.bf16.mxu0 %v564
        %773 = vmatpush1.bf16.msra.mxu0 %v563
        %774 = vmatprep.subr.bf16.mxu0 %v572
        %775 = vmatpush1.bf16.msra.mxu0 %v571
        %776 = vmatprep.subr.bf16.mxu0 0
        %777 = vmatpush1.bf16.msra.mxu0 0
        %778 = vmatprep.subr.bf16.mxu0 0
        %779 = vmatpush1.bf16.msra.mxu0 0
        %780 = vmatprep.subr.bf16.mxu0 0
        %781 = vmatpush1.bf16.msra.mxu0 0
        %782 = vmatprep.subr.bf16.mxu0 0
        %783 = vmatpush1.bf16.msra.mxu0 0
        %784 = vmatprep.subr.bf16.mxu0 0
        %785 = vmatpush1.bf16.msra.mxu0 0
        %786 = vmatprep.subr.bf16.mxu0 0
        %787 = vmatpush1.bf16.msra.mxu0 0
        %788 = vmatprep.subr.bf16.mxu0 0
        %789 = vmatpush1.bf16.msra.mxu0 0
        %790 = vmatprep.subr.bf16.mxu0 0
        %791 = vmatpush1.bf16.msra.mxu0 0
        %792 = vmatprep.mubr.bf16.mxu0 0
        %793 = vmatmul.mubr.bf16.gmra.mrb[0].mxu0 %v252
        %v794 = vpop.f32.mrb[0].mxu0
        %v795 = vadd.f32 0.0, %v794
        %v796 = vpop.f32.mrb[0].mxu0
        %v797 = vadd.f32 0.0, %v796
        %v798 = vpop.f32.mrb[0].mxu0
        %v799 = vpop.f32.mrb[0].mxu0
        %800 = vdwg.mxu0
        %v801 = vsub.f32 0.0, %v672
        %v802 = vsub.f32 0.0, %v674
        %v803 = vsub.f32 0.0, %v713
        %v804 = vsub.f32 0.0, %v715
        %v805 = vmul.f32 %v801, 1.442695
        %v806 = vpow.pop %v805
        %v807 = vmul.f32 %v802, 1.442695
        %v808 = vpow.pop %v807
        %v809 = vmul.f32 %v803, 1.442695
        %v810 = vpow.pop %v809
        %v811 = vmul.f32 %v804, 1.442695
        %v812 = vpow.pop %v811
        %v813 = vadd.f32 %v806, 1.0
        %v814 = vadd.f32 %v808, 1.0
        %v815 = vadd.f32 %v810, 1.0
        %v816 = vadd.f32 %v812, 1.0
        %v817 = vrcp.pop %v813
        %v818 = vrcp.pop %v814
        %v819 = vrcp.pop %v815
        %v820 = vrcp.pop %v816
        %v821 = vmul.f32 %v672, %v817
        %v822 = vmul.f32 %v674, %v818
        %v823 = vmul.f32 %v713, %v819
        %v824 = vmul.f32 %v715, %v820
        %v825 = vmul.f32 %v821, %v754
        %v826 = vmul.f32 %v822, %v756
        %v827 = vmul.f32 %v823, %v795
        %v828 = vmul.f32 %v824, %v797
        %v829 = vld [vmem:[#allocation2] sm:$0xff]
        %v830 = vpack.c.bf16 %v825, %v825
        %v831 = vpack.c.bf16 %v826, %v826
        %v832 = vpack.c.bf16 %v827, %v827
        %v833 = vpack.c.bf16 %v828, %v828
        %v834 = vld [vmem:[#allocation8] sm:$0xf]
        %v835 = vld [vmem:[#allocation8 + $0x4] sm:$0xf]
        %v836 = vld [vmem:[#allocation8 + $0x8] sm:$0xf]
        %v837 = vld [vmem:[#allocation8 + $0xc] sm:$0xf]
        %v838 = vld [vmem:[#allocation8 + $0x10] sm:$0xf]
        %v839 = vld [vmem:[#allocation8 + $0x14] sm:$0xf]
        %v840 = vld [vmem:[#allocation8 + $0x18] sm:$0xf]
        %v841 = vld [vmem:[#allocation8 + $0x1c] sm:$0xf]
        %v842 = vld [vmem:[#allocation8 + $0x20] sm:$0xf]
        %v843 = vld [vmem:[#allocation8 + $0x24] sm:$0xf]
        %v844 = vld [vmem:[#allocation8 + $0x28] sm:$0xf]
        %v845 = vld [vmem:[#allocation8 + $0x2c] sm:$0xf]
        %v846 = vld [vmem:[#allocation8 + $0x30] sm:$0xf]
        %v847 = vld [vmem:[#allocation8 + $0x34] sm:$0xf]
        %v848 = vld [vmem:[#allocation8 + $0x38] sm:$0xf]
        %v849 = vld [vmem:[#allocation8 + $0x3c] sm:$0xf]
        %v850 = vld [vmem:[#allocation8 + $0x40] sm:$0xf]
        %v851 = vld [vmem:[#allocation8 + $0x44] sm:$0xf]
        %v852 = vld [vmem:[#allocation8 + $0x48] sm:$0xf]
        %v853 = vld [vmem:[#allocation8 + $0x4c] sm:$0xf]
        %v854 = vld [vmem:[#allocation8 + $0x50] sm:$0xf]
        %v855 = vld [vmem:[#allocation8 + $0x54] sm:$0xf]
        %v856 = vld [vmem:[#allocation8 + $0x58] sm:$0xf]
        %v857 = vld [vmem:[#allocation8 + $0x5c] sm:$0xf]
        %v858 = vld [vmem:[#allocation8 + $0x60] sm:$0xf]
        %v859 = vld [vmem:[#allocation8 + $0x64] sm:$0xf]
        %v860 = vld [vmem:[#allocation8 + $0x68] sm:$0xf]
        %v861 = vld [vmem:[#allocation8 + $0x6c] sm:$0xf]
        %v862 = vld [vmem:[#allocation8 + $0x70] sm:$0xf]
        %v863 = vld [vmem:[#allocation8 + $0x74] sm:$0xf]
        %v864 = vld [vmem:[#allocation8 + $0x78] sm:$0xf]
        %v865 = vld [vmem:[#allocation8 + $0x7c] sm:$0xf]
        %v866 = vld [vmem:[#allocation8 + $0x80] sm:$0xf]
        %v867 = vld [vmem:[#allocation8 + $0x84] sm:$0xf]
        %v868 = vld [vmem:[#allocation8 + $0x88] sm:$0xf]
        %v869 = vld [vmem:[#allocation8 + $0x8c] sm:$0xf]
        %v870 = vld [vmem:[#allocation8 + $0x90] sm:$0xf]
        %v871 = vld [vmem:[#allocation8 + $0x94] sm:$0xf]
        %v872 = vld [vmem:[#allocation8 + $0x98] sm:$0xf]
        %v873 = vld [vmem:[#allocation8 + $0x9c] sm:$0xf]
        %v874 = vld [vmem:[#allocation8 + $0xa0] sm:$0xf]
        %v875 = vld [vmem:[#allocation8 + $0xa4] sm:$0xf]
        %v876 = vld [vmem:[#allocation8 + $0xa8] sm:$0xf]
        %v877 = vld [vmem:[#allocation8 + $0xac] sm:$0xf]
        %v878 = vld [vmem:[#allocation8 + $0xb0] sm:$0xf]
        %v879 = vld [vmem:[#allocation8 + $0xb4] sm:$0xf]
        %v880 = vld [vmem:[#allocation8 + $0xb8] sm:$0xf]
        %v881 = vld [vmem:[#allocation8 + $0xbc] sm:$0xf]
        %v882 = vld [vmem:[#allocation8 + $0xc0] sm:$0xf]
        %v883 = vld [vmem:[#allocation8 + $0xc4] sm:$0xf]
        %v884 = vld [vmem:[#allocation8 + $0xc8] sm:$0xf]
        %v885 = vld [vmem:[#allocation8 + $0xcc] sm:$0xf]
        %v886 = vld [vmem:[#allocation8 + $0xd0] sm:$0xf]
        %v887 = vld [vmem:[#allocation8 + $0xd4] sm:$0xf]
        %v888 = vld [vmem:[#allocation8 + $0xd8] sm:$0xf]
        %v889 = vld [vmem:[#allocation8 + $0xdc] sm:$0xf]
        %v890 = vld [vmem:[#allocation8 + $0xe0] sm:$0xf]
        %v891 = vld [vmem:[#allocation8 + $0xe4] sm:$0xf]
        %v892 = vld [vmem:[#allocation8 + $0xe8] sm:$0xf]
        %v893 = vld [vmem:[#allocation8 + $0xec] sm:$0xf]
        %v894 = vld [vmem:[#allocation8 + $0xf0] sm:$0xf]
        %v895 = vld [vmem:[#allocation8 + $0xf4] sm:$0xf]
        %v896 = vld [vmem:[#allocation8 + $0xf8] sm:$0xf]
        %v897 = vld [vmem:[#allocation8 + $0xfc] sm:$0xf]
        %v962 = vunpack.c.l.b16 %v834
        %v963 = vunpack.c.l.b16 %v835
        %v964 = vunpack.c.l.b16 %v836
        %v965 = vunpack.c.l.b16 %v837
        %v966 = vunpack.c.l.b16 %v838
        %v967 = vunpack.c.l.b16 %v839
        %v968 = vunpack.c.l.b16 %v840
        %v969 = vunpack.c.l.b16 %v841
        %v970 = vunpack.c.l.b16 %v842
        %v971 = vunpack.c.l.b16 %v843
        %v972 = vunpack.c.l.b16 %v844
        %v973 = vunpack.c.l.b16 %v845
        %v974 = vunpack.c.l.b16 %v846
        %v975 = vunpack.c.l.b16 %v847
        %v976 = vunpack.c.l.b16 %v848
        %v977 = vunpack.c.l.b16 %v849
        %v978 = vunpack.c.l.b16 %v850
        %v979 = vunpack.c.l.b16 %v851
        %v980 = vunpack.c.l.b16 %v852
        %v981 = vunpack.c.l.b16 %v853
        %v982 = vunpack.c.l.b16 %v854
        %v983 = vunpack.c.l.b16 %v855
        %v984 = vunpack.c.l.b16 %v856
        %v985 = vunpack.c.l.b16 %v857
        %v986 = vunpack.c.l.b16 %v858
        %v987 = vunpack.c.l.b16 %v859
        %v988 = vunpack.c.l.b16 %v860
        %v989 = vunpack.c.l.b16 %v861
        %v990 = vunpack.c.l.b16 %v862
        %v991 = vunpack.c.l.b16 %v863
        %v992 = vunpack.c.l.b16 %v864
        %v993 = vunpack.c.l.b16 %v865
        %v994 = vunpack.c.l.b16 %v866
        %v995 = vunpack.c.l.b16 %v867
        %v996 = vunpack.c.l.b16 %v868
        %v997 = vunpack.c.l.b16 %v869
        %v998 = vunpack.c.l.b16 %v870
        %v999 = vunpack.c.l.b16 %v871
        %v1000 = vunpack.c.l.b16 %v872
        %v1001 = vunpack.c.l.b16 %v873
        %v1002 = vunpack.c.l.b16 %v874
        %v1003 = vunpack.c.l.b16 %v875
        %v1004 = vunpack.c.l.b16 %v876
        %v1005 = vunpack.c.l.b16 %v877
        %v1006 = vunpack.c.l.b16 %v878
        %v1007 = vunpack.c.l.b16 %v879
        %v1008 = vunpack.c.l.b16 %v880
        %v1009 = vunpack.c.l.b16 %v881
        %v1010 = vunpack.c.l.b16 %v882
        %v1011 = vunpack.c.l.b16 %v883
        %v1012 = vunpack.c.l.b16 %v884
        %v1013 = vunpack.c.l.b16 %v885
        %v1014 = vunpack.c.l.b16 %v886
        %v1015 = vunpack.c.l.b16 %v887
        %v1016 = vunpack.c.l.b16 %v888
        %v1017 = vunpack.c.l.b16 %v889
        %v1018 = vunpack.c.l.b16 %v890
        %v1019 = vunpack.c.l.b16 %v891
        %v1020 = vunpack.c.l.b16 %v892
        %v1021 = vunpack.c.l.b16 %v893
        %v1022 = vunpack.c.l.b16 %v894
        %v1023 = vunpack.c.l.b16 %v895
        %v1024 = vunpack.c.l.b16 %v896
        %v1025 = vunpack.c.l.b16 %v897
        %v1026 = vpack.c.b16 %v963, %v962
        %v1027 = vpack.c.b16 %v965, %v964
        %v1028 = vpack.c.b16 %v967, %v966
        %v1029 = vpack.c.b16 %v969, %v968
        %v1030 = vpack.c.b16 %v971, %v970
        %v1031 = vpack.c.b16 %v973, %v972
        %v1032 = vpack.c.b16 %v975, %v974
        %v1033 = vpack.c.b16 %v977, %v976
        %v1034 = vpack.c.b16 %v979, %v978
        %v1035 = vpack.c.b16 %v981, %v980
        %v1036 = vpack.c.b16 %v983, %v982
        %v1037 = vpack.c.b16 %v985, %v984
        %v1038 = vpack.c.b16 %v987, %v986
        %v1039 = vpack.c.b16 %v989, %v988
        %v1040 = vpack.c.b16 %v991, %v990
        %v1041 = vpack.c.b16 %v993, %v992
        %v1042 = vpack.c.b16 %v995, %v994
        %v1043 = vpack.c.b16 %v997, %v996
        %v1044 = vpack.c.b16 %v999, %v998
        %v1045 = vpack.c.b16 %v1001, %v1000
        %v1046 = vpack.c.b16 %v1003, %v1002
        %v1047 = vpack.c.b16 %v1005, %v1004
        %v1048 = vpack.c.b16 %v1007, %v1006
        %v1049 = vpack.c.b16 %v1009, %v1008
        %v1050 = vpack.c.b16 %v1011, %v1010
        %v1051 = vpack.c.b16 %v1013, %v1012
        %v1052 = vpack.c.b16 %v1015, %v1014
        %v1053 = vpack.c.b16 %v1017, %v1016
        %v1054 = vpack.c.b16 %v1019, %v1018
        %v1055 = vpack.c.b16 %v1021, %v1020
        %v1056 = vpack.c.b16 %v1023, %v1022
        %v1057 = vpack.c.b16 %v1025, %v1024
        %1090 = vmatprep.subr.bf16.mxu0 0
        %1091 = vmatpush1.bf16.msra.mxu0 %v1026
        %1092 = vmatprep.subr.bf16.mxu0 0
        %1093 = vmatpush1.bf16.msra.mxu0 %v1027
        %1094 = vmatprep.subr.bf16.mxu0 0
        %1095 = vmatpush1.bf16.msra.mxu0 %v1028
        %1096 = vmatprep.subr.bf16.mxu0 0
        %1097 = vmatpush1.bf16.msra.mxu0 %v1029
        %1098 = vmatprep.subr.bf16.mxu0 0
        %1099 = vmatpush1.bf16.msra.mxu0 %v1030
        %1100 = vmatprep.subr.bf16.mxu0 0
        %1101 = vmatpush1.bf16.msra.mxu0 %v1031
        %1102 = vmatprep.subr.bf16.mxu0 0
        %1103 = vmatpush1.bf16.msra.mxu0 %v1032
        %1104 = vmatprep.subr.bf16.mxu0 0
        %1105 = vmatpush1.bf16.msra.mxu0 %v1033
        %1106 = vmatprep.subr.bf16.mxu0 0
        %1107 = vmatpush1.bf16.msra.mxu0 %v1034
        %1108 = vmatprep.subr.bf16.mxu0 0
        %1109 = vmatpush1.bf16.msra.mxu0 %v1035
        %1110 = vmatprep.subr.bf16.mxu0 0
        %1111 = vmatpush1.bf16.msra.mxu0 %v1036
        %1112 = vmatprep.subr.bf16.mxu0 0
        %1113 = vmatpush1.bf16.msra.mxu0 %v1037
        %1114 = vmatprep.subr.bf16.mxu0 0
        %1115 = vmatpush1.bf16.msra.mxu0 %v1038
        %1116 = vmatprep.subr.bf16.mxu0 0
        %1117 = vmatpush1.bf16.msra.mxu0 %v1039
        %1118 = vmatprep.subr.bf16.mxu0 0
        %1119 = vmatpush1.bf16.msra.mxu0 %v1040
        %1120 = vmatprep.subr.bf16.mxu0 0
        %1121 = vmatpush1.bf16.msra.mxu0 %v1041
        %1122 = vmatprep.mubr.bf16.mxu0 %v831
        %1123 = vmatmul.mubr.bf16.gmra.mrb[0].mxu0 %v830
        %v1124 = vpop.f32.mrb[0].mxu0
        %v1125 = vadd.f32 0.0, %v1124
        %v1126 = vpop.f32.mrb[0].mxu0
        %v1127 = vpop.f32.mrb[0].mxu0
        %v1128 = vpop.f32.mrb[0].mxu0
        %1129 = vdwg.mxu0
        %1130 = vmatprep.subr.bf16.mxu0 0
        %1131 = vmatpush1.bf16.msra.mxu0 %v1042
        %1132 = vmatprep.subr.bf16.mxu0 0
        %1133 = vmatpush1.bf16.msra.mxu0 %v1043
        %1134 = vmatprep.subr.bf16.mxu0 0
        %1135 = vmatpush1.bf16.msra.mxu0 %v1044
        %1136 = vmatprep.subr.bf16.mxu0 0
        %1137 = vmatpush1.bf16.msra.mxu0 %v1045
        %1138 = vmatprep.subr.bf16.mxu0 0
        %1139 = vmatpush1.bf16.msra.mxu0 %v1046
        %1140 = vmatprep.subr.bf16.mxu0 0
        %1141 = vmatpush1.bf16.msra.mxu0 %v1047
        %1142 = vmatprep.subr.bf16.mxu0 0
        %1143 = vmatpush1.bf16.msra.mxu0 %v1048
        %1144 = vmatprep.subr.bf16.mxu0 0
        %1145 = vmatpush1.bf16.msra.mxu0 %v1049
        %1146 = vmatprep.subr.bf16.mxu0 0
        %1147 = vmatpush1.bf16.msra.mxu0 %v1050
        %1148 = vmatprep.subr.bf16.mxu0 0
        %1149 = vmatpush1.bf16.msra.mxu0 %v1051
        %1150 = vmatprep.subr.bf16.mxu0 0
        %1151 = vmatpush1.bf16.msra.mxu0 %v1052
        %1152 = vmatprep.subr.bf16.mxu0 0
        %1153 = vmatpush1.bf16.msra.mxu0 %v1053
        %1154 = vmatprep.subr.bf16.mxu0 0
        %1155 = vmatpush1.bf16.msra.mxu0 %v1054
        %1156 = vmatprep.subr.bf16.mxu0 0
        %1157 = vmatpush1.bf16.msra.mxu0 %v1055
        %1158 = vmatprep.subr.bf16.mxu0 0
        %1159 = vmatpush1.bf16.msra.mxu0 %v1056
        %1160 = vmatprep.subr.bf16.mxu0 0
        %1161 = vmatpush1.bf16.msra.mxu0 %v1057
        %1162 = vmatprep.mubr.bf16.mxu0 %v833
        %1163 = vmatmul.mubr.bf16.gmra.mrb[0].mxu0 %v832
        %v1164 = vpop.f32.mrb[0].mxu0
        %v1165 = vadd.f32 %v1125, %v1164
        %v1166 = vpop.f32.mrb[0].mxu0
        %v1167 = vpop.f32.mrb[0].mxu0
        %v1168 = vpop.f32.mrb[0].mxu0
        %1169 = vdwg.mxu0
        %v1170 = vadd.f32 %v829, %v1165
        %1171 = vst [vmem:[#allocation2] sm:$0xff] %v1170
        // Predicated region
        $region49: #{feedforward_forward.1} parent=31 // pred_check
          %p1172 = pneg %p246
        $region50: #{feedforward_forward.1} parent=31 // pred_check_branch
          %1174 = sbr.rel (%p1172) target = $region52
        $region51: #{feedforward_forward.1} parent=31 // pred_region
          %v1175 = vld [vmem:[#allocation2] sm:$0xff]
          %1176 = vst [vmem:[%s242] sm:$0xff] %v1175
        $region52: #{feedforward_forward.1} parent=31 // pred_fallthru
          _
        %s1177 = sand.u32 %s119, 1
        %s1178 = scalar_lea.sflag [#allocation5], %s1177
        %s1179 = sand.u32 %s119, 1
        %s1180 = smul.addr %s1179, 8
        %s1181 = scalar_lea.vmem [#allocation9], %s1180
        // Predicated region
        $region53: #{feedforward_forward.1} parent=31 // pred_check
          %p1182 = pneg %p129
        $region54: #{feedforward_forward.1} parent=31 // pred_check_branch
          %1184 = sbr.rel (%p1182) target = $region56
        $region55: #{feedforward_forward.1} parent=31 // pred_region
          %s1186 = ssub.s32 128, 128
          %1187 = vsyncadd %s1178, %s1186
          %s1188 = smul.addr %s25, 128
          %s1189 = scalar_lea.hbm %s3, %s1188
          %s1191 = sshll.u32 %s1181, 4
          %s1192 = int_to_ptr.vmem [resolvable:$true] %s1191
          %1194 = dma.vmem_to_hbm [thread:$0]  %s1192, 128, %s1189, %s1178
        $region56: #{feedforward_forward.1} parent=31 // pred_fallthru
          _
      $region32: #{feedforward_forward.1} parent=5 // pred_fallthru
        _
      %p1195 = scmp.le.s32.totalorder 2, %s16
      // Predicated region
      $region57: #{feedforward_forward.1} parent=5 // pred_check
        %p1196 = pneg %p1195
      $region58: #{feedforward_forward.1} parent=5 // pred_check_branch
        %1198 = sbr.rel (%p1196) target = $region60
      $region59: #{feedforward_forward.1} parent=5 // pred_region
        %s1199 = ssub.s32 %s16, 2
        // Predicated region
        $region61: #{feedforward_forward.1} parent=59 // pred_check
          %p1200 = pneg %p135
        $region62: #{feedforward_forward.1} parent=59 // pred_check_branch
          %1202 = sbr.rel (%p1200) target = $region64
        $region63: #{feedforward_forward.1} parent=59 // pred_region
          %s1203 = sand.u32 %s120, 1
          %s1204 = scalar_lea.sflag [#allocation5], %s1203
          %s1205 = sand.u32 %s120, 1
          %s1206 = smul.addr %s1205, 8
          %s1207 = scalar_lea.vmem [#allocation9], %s1206
          %1208 = dma.done %s1204, 128
        $region64: #{feedforward_forward.1} parent=59 // pred_fallthru
          _
      $region60: #{feedforward_forward.1} parent=5 // pred_fallthru
        _
    $region6: #{feedforward_forward.1} parent=1 // loop_footer
      %s20 = sadd.s32 1, %s16
    $region7: #{feedforward_forward.1} parent=1 // loop_footer_branch
      %15 = sbr.rel target = $region3
    $region8: #{feedforward_forward.1} parent=1 // loop_exit
      _
    %1209 = vsyncpa [#allocation4], 1
    %s1210 = scalar_lea.sflag [#allocation4], 1
    %1211 = vsyncpa %s1210, 1
    %1212 = vsyncpa [#allocation7], 1
    %1213 = vsyncpa [#allocation5], 1
    %s1214 = scalar_lea.sflag [#allocation5], 1
    %1215 = vsyncpa %s1214, 1

</llo_original>
